<compile_context>
chip_gen: v7x
topology: tpu7x:2x2x1
jax: 0.10.0
libtpu: 0.0.40
codegen_flags: <defaults>
</compile_context>

<pallas_src>
import functools

import jax
import jax.numpy as jnp
from jax.experimental import pallas as pl
from jax.experimental.pallas import tpu as pltpu


LANE = 128                     # lane width; feature axis is padded to this
MAX_ROWS_PER_STEP = 32         # output rows per grid step (f32 tables)
GATHER_ROWS_PER_STEP = 8       # rows per step on the large-table fallback
# Resident-table budget: table must fit VMEM twice (double-buffer headroom)
# plus output blocks on every chip, including v7x's 64 MiB physical VMEM.
RESIDENT_TABLE_BUDGET = 16 * 1024 * 1024


def _round_up(x, m):
    return pl.cdiv(x, m) * m


# ---------------------------------------------------------------------------
# Resident-table kernel: whole table lives in VMEM, gather is VMEM-local.
# ---------------------------------------------------------------------------
def _resident_kernel(rows_per_step, y_ref, table_ref, o_ref):
    # y_ref     : (Bp,) int32 in SMEM (scalar prefetch).
    # table_ref : (C, dimp) VMEM -- full lane-padded table, resident across the
    #             whole grid (constant index_map => DMA'd once).
    # o_ref     : (rows_per_step, dimp) VMEM output block.
    base = pl.program_id(0) * rows_per_step
    rows = [table_ref[pl.ds(y_ref[base + j], 1), :] for j in range(rows_per_step)]
    o_ref[...] = jnp.concatenate(rows, axis=0)   # one unmasked full-tile store


# ---------------------------------------------------------------------------
# Large-table fallback kernel: rows arrive as data-dependent DMA'd operands.
# ---------------------------------------------------------------------------
def _gather_kernel(y_ref, *refs):
    # refs[:-1] : GATHER_ROWS_PER_STEP gathered rows, each (1, 1, dimp) VMEM.
    # refs[-1]  : (GATHER_ROWS_PER_STEP, dimp) VMEM output block.
    del y_ref
    row_refs, o_ref = refs[:-1], refs[-1]
    o_ref[...] = jnp.concatenate([r[...][0] for r in row_refs], axis=0)


def label_embedding(y, emb_table, *, force_gather=False):
    """Pallas forward of LabelEmbedding: returns emb_table[y].

    y:         (B,) integer labels.
    emb_table: (num_classes, dim) float32 embedding weight.
    """
    assert jnp.issubdtype(y.dtype, jnp.integer), "labels must not be float"
    (B,) = y.shape
    C, dim = emb_table.shape
    itemsize = jnp.dtype(emb_table.dtype).itemsize

    # Lane-dense feature axis. In production pad once at init; here it is a
    # no-op for dim % 128 == 0 so there is no per-call HBM copy of the weight.
    dimp = _round_up(dim, LANE)
    table = emb_table if dimp == dim else jnp.pad(emb_table, ((0, 0), (0, dimp - dim)))

    # Clamp labels so an out-of-range class id can never drive an OOB access.
    y_i32 = jnp.clip(y.astype(jnp.int32), 0, C - 1)

    table_bytes = C * dimp * itemsize
    use_resident = (not force_gather) and (table_bytes <= RESIDENT_TABLE_BUDGET)

    if use_resident:
        rows_per_step = min(MAX_ROWS_PER_STEP, _round_up(B, 8))
        Bp = _round_up(B, rows_per_step)
        nb = Bp // rows_per_step
        if Bp != B:
            y_i32 = jnp.pad(y_i32, (0, Bp - B))          # pads with class 0

        out_block_bytes = rows_per_step * dimp * itemsize
        vmem_limit = int(min(2 * table_bytes + 2 * out_block_bytes + (4 << 20),
                             48 << 20))                  # v7x-safe cap

        grid_spec = pltpu.PrefetchScalarGridSpec(
            num_scalar_prefetch=1,
            grid=(nb,),
            # Constant index_map => table is resident, DMA'd once per call.
            in_specs=[pl.BlockSpec((C, dimp), lambda i, y_pref: (0, 0))],
            out_specs=pl.BlockSpec((rows_per_step, dimp),
                                   lambda i, y_pref: (i, 0)),
        )
        out = pl.pallas_call(
            functools.partial(_resident_kernel, rows_per_step),
            grid_spec=grid_spec,
            out_shape=jax.ShapeDtypeStruct((Bp, dimp), table.dtype),
            compiler_params=pltpu.CompilerParams(
                dimension_semantics=("parallel",),
                vmem_limit_bytes=vmem_limit),
            cost_estimate=pl.CostEstimate(
                flops=0, transcendentals=0,
                bytes_accessed=table_bytes + Bp * dimp * itemsize + Bp * 4),
        )(y_i32, table)
    else:
        # Vocab-scale tables: per-row data-dependent DMA gather (pattern P2).
        rows_per_step = GATHER_ROWS_PER_STEP
        Bp = _round_up(B, rows_per_step)
        nb = Bp // rows_per_step
        if Bp != B:
            y_i32 = jnp.pad(y_i32, (0, Bp - B))

        # Singleton middle axis so each (1,1,dimp) row block's trailing dims
        # equal the array's trailing dims (satisfies the (8,128) rule).
        table3 = table.reshape(C, 1, dimp)

        def row_index_map(i, y_pref, *, j):
            return (y_pref[i * rows_per_step + j], 0, 0)

        in_specs = [
            pl.BlockSpec((1, 1, dimp), functools.partial(row_index_map, j=j),
                         pipeline_mode=pl.Buffered(3))   # hide tiny row DMAs
            for j in range(rows_per_step)
        ]
        grid_spec = pltpu.PrefetchScalarGridSpec(
            num_scalar_prefetch=1,
            grid=(nb,),
            in_specs=in_specs,
            out_specs=pl.BlockSpec((rows_per_step, dimp),
                                   lambda i, y_pref: (i, 0)),
        )
        out = pl.pallas_call(
            _gather_kernel,
            grid_spec=grid_spec,
            out_shape=jax.ShapeDtypeStruct((Bp, dimp), table.dtype),
            compiler_params=pltpu.CompilerParams(
                dimension_semantics=("parallel",)),
            cost_estimate=pl.CostEstimate(
                flops=0, transcendentals=0,
                bytes_accessed=2 * Bp * dimp * itemsize + Bp * 4),
        )(y_i32, *([table3] * rows_per_step))

    # Strip padding (no-op when B and dim are already aligned).
    return out[:B, :dim]


def make_params(dim, num_classes, seed=0):
    """Embedding weight init mirroring torch's normal_(std=0.02)."""
    key = jax.random.PRNGKey(seed)
    return 0.02 * jax.random.normal(key, (num_classes, dim), jnp.float32)


def label_embedding_ref(y, emb_table):
    """Pure-JAX reference matching the PyTorch forward."""
    return jnp.take(emb_table, y, axis=0)


if __name__ == "__main__":
    num_classes = 10
    dim = 128          # lane-dense embedding width
    B = 40             # -> 2 grid steps of 32 rows on the resident path

    emb_table = make_params(dim, num_classes, seed=0)

    key = jax.random.PRNGKey(0)
    y = jax.random.randint(key, (B,), 0, num_classes, dtype=jnp.int32)

    ref = label_embedding_ref(y, emb_table)

    # Default path: VMEM-resident table.
    out = jax.block_until_ready(label_embedding(y, emb_table))
    assert out.shape == (B, dim)
    assert jnp.allclose(out, ref, rtol=1e-6, atol=1e-6), "resident path mismatch"

    # Fallback path (vocab-scale tables), forced here for coverage.
    out_g = jax.block_until_ready(label_embedding(y, emb_table, force_gather=True))
    assert jnp.allclose(out_g, ref, rtol=1e-6, atol=1e-6), "gather path mismatch"

    print("KERNEL_OK")
</pallas_src>

<mosaic_0001>
module attributes {stable_mosaic.version = 11 : i64} {
  func.func @_resident_kernel(%arg0: i32, %arg1: memref<64xi32, #tpu.memory_space<smem>>, %arg2: memref<10x128xf32, #tpu.memory_space<vmem>>, %arg3: memref<32x128xf32, #tpu.memory_space<vmem>>) attributes {dimension_semantics = [#tpu.dimension_semantics<parallel>], iteration_bounds = array<i64: 2>, scalar_prefetch = 1 : i64, scratch_operands = 0 : i64, tpu.core_type = #tpu.core_type<tc>, window_params = [{pipeline_mode = #tpu.pipeline_mode<synchronous>, transform_indices = @transform_0, window_bounds = array<i64: 10, 128>}, {transform_indices = @transform_1, window_bounds = array<i64: 32, 128>}]} {
    %c32_i32 = arith.constant 32 : i32
    %0 = arith.muli %arg0, %c32_i32 : i32
    %c0_i32 = arith.constant 0 : i32
    %1 = arith.addi %0, %c0_i32 : i32
    %2 = arith.index_cast %1 : i32 to index
    %3 = memref.load %arg1[%2] : memref<64xi32, #tpu.memory_space<smem>>
    %4 = arith.index_cast %3 : i32 to index
    %c0 = arith.constant 0 : index
    %5 = vector.load %arg2[%4, %c0] : memref<10x128xf32, #tpu.memory_space<vmem>>, vector<1x128xf32>
    %c1_i32 = arith.constant 1 : i32
    %6 = arith.addi %0, %c1_i32 : i32
    %7 = arith.index_cast %6 : i32 to index
    %8 = memref.load %arg1[%7] : memref<64xi32, #tpu.memory_space<smem>>
    %9 = arith.index_cast %8 : i32 to index
    %c0_0 = arith.constant 0 : index
    %10 = vector.load %arg2[%9, %c0_0] : memref<10x128xf32, #tpu.memory_space<vmem>>, vector<1x128xf32>
    %c2_i32 = arith.constant 2 : i32
    %11 = arith.addi %0, %c2_i32 : i32
    %12 = arith.index_cast %11 : i32 to index
    %13 = memref.load %arg1[%12] : memref<64xi32, #tpu.memory_space<smem>>
    %14 = arith.index_cast %13 : i32 to index
    %c0_1 = arith.constant 0 : index
    %15 = vector.load %arg2[%14, %c0_1] : memref<10x128xf32, #tpu.memory_space<vmem>>, vector<1x128xf32>
    %c3_i32 = arith.constant 3 : i32
    %16 = arith.addi %0, %c3_i32 : i32
    %17 = arith.index_cast %16 : i32 to index
    %18 = memref.load %arg1[%17] : memref<64xi32, #tpu.memory_space<smem>>
    %19 = arith.index_cast %18 : i32 to index
    %c0_2 = arith.constant 0 : index
    %20 = vector.load %arg2[%19, %c0_2] : memref<10x128xf32, #tpu.memory_space<vmem>>, vector<1x128xf32>
    %c4_i32 = arith.constant 4 : i32
    %21 = arith.addi %0, %c4_i32 : i32
    %22 = arith.index_cast %21 : i32 to index
    %23 = memref.load %arg1[%22] : memref<64xi32, #tpu.memory_space<smem>>
    %24 = arith.index_cast %23 : i32 to index
    %c0_3 = arith.constant 0 : index
    %25 = vector.load %arg2[%24, %c0_3] : memref<10x128xf32, #tpu.memory_space<vmem>>, vector<1x128xf32>
    %c5_i32 = arith.constant 5 : i32
    %26 = arith.addi %0, %c5_i32 : i32
    %27 = arith.index_cast %26 : i32 to index
    %28 = memref.load %arg1[%27] : memref<64xi32, #tpu.memory_space<smem>>
    %29 = arith.index_cast %28 : i32 to index
    %c0_4 = arith.constant 0 : index
    %30 = vector.load %arg2[%29, %c0_4] : memref<10x128xf32, #tpu.memory_space<vmem>>, vector<1x128xf32>
    %c6_i32 = arith.constant 6 : i32
    %31 = arith.addi %0, %c6_i32 : i32
    %32 = arith.index_cast %31 : i32 to index
    %33 = memref.load %arg1[%32] : memref<64xi32, #tpu.memory_space<smem>>
    %34 = arith.index_cast %33 : i32 to index
    %c0_5 = arith.constant 0 : index
    %35 = vector.load %arg2[%34, %c0_5] : memref<10x128xf32, #tpu.memory_space<vmem>>, vector<1x128xf32>
    %c7_i32 = arith.constant 7 : i32
    %36 = arith.addi %0, %c7_i32 : i32
    %37 = arith.index_cast %36 : i32 to index
    %38 = memref.load %arg1[%37] : memref<64xi32, #tpu.memory_space<smem>>
    %39 = arith.index_cast %38 : i32 to index
    %c0_6 = arith.constant 0 : index
    %40 = vector.load %arg2[%39, %c0_6] : memref<10x128xf32, #tpu.memory_space<vmem>>, vector<1x128xf32>
    %c8_i32 = arith.constant 8 : i32
    %41 = arith.addi %0, %c8_i32 : i32
    %42 = arith.index_cast %41 : i32 to index
    %43 = memref.load %arg1[%42] : memref<64xi32, #tpu.memory_space<smem>>
    %44 = arith.index_cast %43 : i32 to index
    %c0_7 = arith.constant 0 : index
    %45 = vector.load %arg2[%44, %c0_7] : memref<10x128xf32, #tpu.memory_space<vmem>>, vector<1x128xf32>
    %c9_i32 = arith.constant 9 : i32
    %46 = arith.addi %0, %c9_i32 : i32
    %47 = arith.index_cast %46 : i32 to index
    %48 = memref.load %arg1[%47] : memref<64xi32, #tpu.memory_space<smem>>
    %49 = arith.index_cast %48 : i32 to index
    %c0_8 = arith.constant 0 : index
    %50 = vector.load %arg2[%49, %c0_8] : memref<10x128xf32, #tpu.memory_space<vmem>>, vector<1x128xf32>
    %c10_i32 = arith.constant 10 : i32
    %51 = arith.addi %0, %c10_i32 : i32
    %52 = arith.index_cast %51 : i32 to index
    %53 = memref.load %arg1[%52] : memref<64xi32, #tpu.memory_space<smem>>
    %54 = arith.index_cast %53 : i32 to index
    %c0_9 = arith.constant 0 : index
    %55 = vector.load %arg2[%54, %c0_9] : memref<10x128xf32, #tpu.memory_space<vmem>>, vector<1x128xf32>
    %c11_i32 = arith.constant 11 : i32
    %56 = arith.addi %0, %c11_i32 : i32
    %57 = arith.index_cast %56 : i32 to index
    %58 = memref.load %arg1[%57] : memref<64xi32, #tpu.memory_space<smem>>
    %59 = arith.index_cast %58 : i32 to index
    %c0_10 = arith.constant 0 : index
    %60 = vector.load %arg2[%59, %c0_10] : memref<10x128xf32, #tpu.memory_space<vmem>>, vector<1x128xf32>
    %c12_i32 = arith.constant 12 : i32
    %61 = arith.addi %0, %c12_i32 : i32
    %62 = arith.index_cast %61 : i32 to index
    %63 = memref.load %arg1[%62] : memref<64xi32, #tpu.memory_space<smem>>
    %64 = arith.index_cast %63 : i32 to index
    %c0_11 = arith.constant 0 : index
    %65 = vector.load %arg2[%64, %c0_11] : memref<10x128xf32, #tpu.memory_space<vmem>>, vector<1x128xf32>
    %c13_i32 = arith.constant 13 : i32
    %66 = arith.addi %0, %c13_i32 : i32
    %67 = arith.index_cast %66 : i32 to index
    %68 = memref.load %arg1[%67] : memref<64xi32, #tpu.memory_space<smem>>
    %69 = arith.index_cast %68 : i32 to index
    %c0_12 = arith.constant 0 : index
    %70 = vector.load %arg2[%69, %c0_12] : memref<10x128xf32, #tpu.memory_space<vmem>>, vector<1x128xf32>
    %c14_i32 = arith.constant 14 : i32
    %71 = arith.addi %0, %c14_i32 : i32
    %72 = arith.index_cast %71 : i32 to index
    %73 = memref.load %arg1[%72] : memref<64xi32, #tpu.memory_space<smem>>
    %74 = arith.index_cast %73 : i32 to index
    %c0_13 = arith.constant 0 : index
    %75 = vector.load %arg2[%74, %c0_13] : memref<10x128xf32, #tpu.memory_space<vmem>>, vector<1x128xf32>
    %c15_i32 = arith.constant 15 : i32
    %76 = arith.addi %0, %c15_i32 : i32
    %77 = arith.index_cast %76 : i32 to index
    %78 = memref.load %arg1[%77] : memref<64xi32, #tpu.memory_space<smem>>
    %79 = arith.index_cast %78 : i32 to index
    %c0_14 = arith.constant 0 : index
    %80 = vector.load %arg2[%79, %c0_14] : memref<10x128xf32, #tpu.memory_space<vmem>>, vector<1x128xf32>
    %c16_i32 = arith.constant 16 : i32
    %81 = arith.addi %0, %c16_i32 : i32
    %82 = arith.index_cast %81 : i32 to index
    %83 = memref.load %arg1[%82] : memref<64xi32, #tpu.memory_space<smem>>
    %84 = arith.index_cast %83 : i32 to index
    %c0_15 = arith.constant 0 : index
    %85 = vector.load %arg2[%84, %c0_15] : memref<10x128xf32, #tpu.memory_space<vmem>>, vector<1x128xf32>
    %c17_i32 = arith.constant 17 : i32
    %86 = arith.addi %0, %c17_i32 : i32
    %87 = arith.index_cast %86 : i32 to index
    %88 = memref.load %arg1[%87] : memref<64xi32, #tpu.memory_space<smem>>
    %89 = arith.index_cast %88 : i32 to index
    %c0_16 = arith.constant 0 : index
    %90 = vector.load %arg2[%89, %c0_16] : memref<10x128xf32, #tpu.memory_space<vmem>>, vector<1x128xf32>
    %c18_i32 = arith.constant 18 : i32
    %91 = arith.addi %0, %c18_i32 : i32
    %92 = arith.index_cast %91 : i32 to index
    %93 = memref.load %arg1[%92] : memref<64xi32, #tpu.memory_space<smem>>
    %94 = arith.index_cast %93 : i32 to index
    %c0_17 = arith.constant 0 : index
    %95 = vector.load %arg2[%94, %c0_17] : memref<10x128xf32, #tpu.memory_space<vmem>>, vector<1x128xf32>
    %c19_i32 = arith.constant 19 : i32
    %96 = arith.addi %0, %c19_i32 : i32
    %97 = arith.index_cast %96 : i32 to index
    %98 = memref.load %arg1[%97] : memref<64xi32, #tpu.memory_space<smem>>
    %99 = arith.index_cast %98 : i32 to index
    %c0_18 = arith.constant 0 : index
    %100 = vector.load %arg2[%99, %c0_18] : memref<10x128xf32, #tpu.memory_space<vmem>>, vector<1x128xf32>
    %c20_i32 = arith.constant 20 : i32
    %101 = arith.addi %0, %c20_i32 : i32
    %102 = arith.index_cast %101 : i32 to index
    %103 = memref.load %arg1[%102] : memref<64xi32, #tpu.memory_space<smem>>
    %104 = arith.index_cast %103 : i32 to index
    %c0_19 = arith.constant 0 : index
    %105 = vector.load %arg2[%104, %c0_19] : memref<10x128xf32, #tpu.memory_space<vmem>>, vector<1x128xf32>
    %c21_i32 = arith.constant 21 : i32
    %106 = arith.addi %0, %c21_i32 : i32
    %107 = arith.index_cast %106 : i32 to index
    %108 = memref.load %arg1[%107] : memref<64xi32, #tpu.memory_space<smem>>
    %109 = arith.index_cast %108 : i32 to index
    %c0_20 = arith.constant 0 : index
    %110 = vector.load %arg2[%109, %c0_20] : memref<10x128xf32, #tpu.memory_space<vmem>>, vector<1x128xf32>
    %c22_i32 = arith.constant 22 : i32
    %111 = arith.addi %0, %c22_i32 : i32
    %112 = arith.index_cast %111 : i32 to index
    %113 = memref.load %arg1[%112] : memref<64xi32, #tpu.memory_space<smem>>
    %114 = arith.index_cast %113 : i32 to index
    %c0_21 = arith.constant 0 : index
    %115 = vector.load %arg2[%114, %c0_21] : memref<10x128xf32, #tpu.memory_space<vmem>>, vector<1x128xf32>
    %c23_i32 = arith.constant 23 : i32
    %116 = arith.addi %0, %c23_i32 : i32
    %117 = arith.index_cast %116 : i32 to index
    %118 = memref.load %arg1[%117] : memref<64xi32, #tpu.memory_space<smem>>
    %119 = arith.index_cast %118 : i32 to index
    %c0_22 = arith.constant 0 : index
    %120 = vector.load %arg2[%119, %c0_22] : memref<10x128xf32, #tpu.memory_space<vmem>>, vector<1x128xf32>
    %c24_i32 = arith.constant 24 : i32
    %121 = arith.addi %0, %c24_i32 : i32
    %122 = arith.index_cast %121 : i32 to index
    %123 = memref.load %arg1[%122] : memref<64xi32, #tpu.memory_space<smem>>
    %124 = arith.index_cast %123 : i32 to index
    %c0_23 = arith.constant 0 : index
    %125 = vector.load %arg2[%124, %c0_23] : memref<10x128xf32, #tpu.memory_space<vmem>>, vector<1x128xf32>
    %c25_i32 = arith.constant 25 : i32
    %126 = arith.addi %0, %c25_i32 : i32
    %127 = arith.index_cast %126 : i32 to index
    %128 = memref.load %arg1[%127] : memref<64xi32, #tpu.memory_space<smem>>
    %129 = arith.index_cast %128 : i32 to index
    %c0_24 = arith.constant 0 : index
    %130 = vector.load %arg2[%129, %c0_24] : memref<10x128xf32, #tpu.memory_space<vmem>>, vector<1x128xf32>
    %c26_i32 = arith.constant 26 : i32
    %131 = arith.addi %0, %c26_i32 : i32
    %132 = arith.index_cast %131 : i32 to index
    %133 = memref.load %arg1[%132] : memref<64xi32, #tpu.memory_space<smem>>
    %134 = arith.index_cast %133 : i32 to index
    %c0_25 = arith.constant 0 : index
    %135 = vector.load %arg2[%134, %c0_25] : memref<10x128xf32, #tpu.memory_space<vmem>>, vector<1x128xf32>
    %c27_i32 = arith.constant 27 : i32
    %136 = arith.addi %0, %c27_i32 : i32
    %137 = arith.index_cast %136 : i32 to index
    %138 = memref.load %arg1[%137] : memref<64xi32, #tpu.memory_space<smem>>
    %139 = arith.index_cast %138 : i32 to index
    %c0_26 = arith.constant 0 : index
    %140 = vector.load %arg2[%139, %c0_26] : memref<10x128xf32, #tpu.memory_space<vmem>>, vector<1x128xf32>
    %c28_i32 = arith.constant 28 : i32
    %141 = arith.addi %0, %c28_i32 : i32
    %142 = arith.index_cast %141 : i32 to index
    %143 = memref.load %arg1[%142] : memref<64xi32, #tpu.memory_space<smem>>
    %144 = arith.index_cast %143 : i32 to index
    %c0_27 = arith.constant 0 : index
    %145 = vector.load %arg2[%144, %c0_27] : memref<10x128xf32, #tpu.memory_space<vmem>>, vector<1x128xf32>
    %c29_i32 = arith.constant 29 : i32
    %146 = arith.addi %0, %c29_i32 : i32
    %147 = arith.index_cast %146 : i32 to index
    %148 = memref.load %arg1[%147] : memref<64xi32, #tpu.memory_space<smem>>
    %149 = arith.index_cast %148 : i32 to index
    %c0_28 = arith.constant 0 : index
    %150 = vector.load %arg2[%149, %c0_28] : memref<10x128xf32, #tpu.memory_space<vmem>>, vector<1x128xf32>
    %c30_i32 = arith.constant 30 : i32
    %151 = arith.addi %0, %c30_i32 : i32
    %152 = arith.index_cast %151 : i32 to index
    %153 = memref.load %arg1[%152] : memref<64xi32, #tpu.memory_space<smem>>
    %154 = arith.index_cast %153 : i32 to index
    %c0_29 = arith.constant 0 : index
    %155 = vector.load %arg2[%154, %c0_29] : memref<10x128xf32, #tpu.memory_space<vmem>>, vector<1x128xf32>
    %c31_i32 = arith.constant 31 : i32
    %156 = arith.addi %0, %c31_i32 : i32
    %157 = arith.index_cast %156 : i32 to index
    %158 = memref.load %arg1[%157] : memref<64xi32, #tpu.memory_space<smem>>
    %159 = arith.index_cast %158 : i32 to index
    %c0_30 = arith.constant 0 : index
    %160 = vector.load %arg2[%159, %c0_30] : memref<10x128xf32, #tpu.memory_space<vmem>>, vector<1x128xf32>
    %161 = tpu.concatenate %5, %10, %15, %20, %25, %30, %35, %40, %45, %50, %55, %60, %65, %70, %75, %80 in 0 : vector<1x128xf32>, vector<1x128xf32>, vector<1x128xf32>, vector<1x128xf32>, vector<1x128xf32>, vector<1x128xf32>, vector<1x128xf32>, vector<1x128xf32>, vector<1x128xf32>, vector<1x128xf32>, vector<1x128xf32>, vector<1x128xf32>, vector<1x128xf32>, vector<1x128xf32>, vector<1x128xf32>, vector<1x128xf32> -> vector<16x128xf32>
    %162 = tpu.concatenate %85, %90, %95, %100, %105, %110, %115, %120, %125, %130, %135, %140, %145, %150, %155, %160 in 0 : vector<1x128xf32>, vector<1x128xf32>, vector<1x128xf32>, vector<1x128xf32>, vector<1x128xf32>, vector<1x128xf32>, vector<1x128xf32>, vector<1x128xf32>, vector<1x128xf32>, vector<1x128xf32>, vector<1x128xf32>, vector<1x128xf32>, vector<1x128xf32>, vector<1x128xf32>, vector<1x128xf32>, vector<1x128xf32> -> vector<16x128xf32>
    %163 = tpu.concatenate %161, %162 in 0 : vector<16x128xf32>, vector<16x128xf32> -> vector<32x128xf32>
    %c0_31 = arith.constant 0 : index
    %c0_32 = arith.constant 0 : index
    %164 = vector.load %arg3[%c0_31, %c0_32] : memref<32x128xf32, #tpu.memory_space<vmem>>, vector<32x128xf32>
    tpu.vector_store %arg3[%c0_31, %c0_32], %163 {strides = array<i32>} : memref<32x128xf32, #tpu.memory_space<vmem>>, vector<32x128xf32>,
    return
  }
  func.func @transform_0(%arg0: i32, %arg1: memref<64xi32, #tpu.memory_space<smem>>) -> (i32, i32) {
    %c0_i32 = arith.constant 0 : i32
    %c0_i32_0 = arith.constant 0 : i32
    %c0_i32_1 = arith.constant 0 : i32
    return %c0_i32, %c0_i32_0 : i32, i32
  }
  func.func @transform_1(%arg0: i32, %arg1: memref<64xi32, #tpu.memory_space<smem>>) -> (i32, i32) {
    %c0_i32 = arith.constant 0 : i32
    %c0_i32_0 = arith.constant 0 : i32
    return %arg0, %c0_i32 : i32, i32
  }
}

</mosaic_0001>

<llo_original>
// kernel: tpu_custom_call.1
$region0: #{tpu_custom_call.1}
  #allocation0 [shape = 'u32[]', space=smem, size = 0x4, offset = 0x4, fixed_abs, tag = 'smem constant byte address 0x4 - core index']
  #allocation1 [shape = 'u32[144,128]{1,0:T(1,128)}', space=vmem, size = 0x12000, scoped, tag = 'internal scratch']
  #allocation2 [shape = 's32[1]{0}', space=sflag, size = 0x4, scoped, tag = 'scoped memory for tpu_custom_call.1']
  #allocation3 [shape = 'u8[512]{0}', space=smem, size = 0x200, scoped, tag = 'prefetched SMEM operand 0']
  %s0 = inlined_call_operand.hbm [shape: s32[64], index: 0, kind: input, shape index: {}]
  %s1 = inlined_call_operand.hbm [shape: f32[10,128], index: 1, kind: input, shape index: {}]
  %s2 = inlined_call_operand.hbm [shape: f32[64,128], index: 2, kind: output, shape index: {}]
  %s3 = sld [smem:[#allocation0]]
  $region41: #{tpu_custom_call.1} parent=0
    _
  %s5 = ssub.s32 1, %s3
  %s6 = scalar_select 0, %s5, %s3
  %8 = dma.hbm_to_smem %s0, 16, [#allocation3], [#allocation2]
  %9 = dma.done [#allocation2], 16
  %10 = sfence
  $region1: #{tpu_custom_call.1} parent=0
    #allocation4 [shape = 'u8[8192]{0}', space=vmem, size = 0x2000, scoped, tag = 'input window, operand 1, single buffered']
    #allocation5 [shape = 's32[2]{0}', space=sflag, size = 0x8, scoped, tag = 'scoped memory for tpu_custom_call.1']
    #allocation6 [shape = 's32[2]{0}', space=sflag, size = 0x8, scoped, tag = 'scoped memory for tpu_custom_call.1']
    #allocation7 [shape = 'u8[32768]{0}', space=vmem, size = 0x8000, scoped, tag = 'output window, operand 0']
    %11 = vsyncpa [#allocation5], 0
    %12 = vsyncpa [#allocation6], 0
    %s13 = scalar_lea.sflag [#allocation6], 1
    %14 = vsyncpa %s13, 0
    loop: start=0, step=1, limit=4
    $region2: #{tpu_custom_call.1} parent=1 // loop_pre_header
      _
    $region3: #{tpu_custom_call.1} parent=1 // loop_header
      %s16 = sphi 0, %s20
      %p17 = scmp.ge.s32.totalorder %s16, 4
      %s24 = sphi 0, %s24
      %s26 = sphi 0, %s24
      %s27 = sphi 0, %s26
      %s41 = sphi 0, %s27
      %s47 = sphi 0, %s49
      %s50 = sphi 0, %s47
      %s51 = sphi 0, %s50
      %s67 = sphi 0, %s51
    $region4: #{tpu_custom_call.1} parent=1 // loop_header_branch
      %19 = sbr.rel (%p17) target = $region8
    $region5: #{tpu_custom_call.1} parent=1 // loop_body
      %s21 = ssub.s32 %s16, 1
      %s22 = ssub.s32 %s16, 2
      %s23 = sadd.s32 %s16, 1
      %s25 = sadd.s32 %s24, 1
      %p28 = scmp.eq.s32.totalorder %s16, 1
      %p29 = scmp.ne.s32.totalorder %s24, %s26
      %p30 = scmp.eq.s32.totalorder %s16, 0
      %p31 = por %p29, %p30
      %p32 = scmp.ne.s32.totalorder %s24, %s26
      %p33 = scmp.eq.s32.totalorder %s21, 1
      %p34 = por %p32, %p33
      %p35 = scmp.ne.s32.totalorder %s26, %s27
      %p36 = scmp.eq.s32.totalorder %s21, 0
      %p37 = por %p35, %p36
      %p38 = scmp.ne.s32.totalorder %s26, %s27
      %p39 = scmp.eq.s32.totalorder %s22, 1
      %p40 = por %p38, %p39
      %p42 = scmp.ne.s32.totalorder %s27, %s41
      %p43 = scmp.eq.s32.totalorder %s22, 0
      %p44 = por %p42, %p43
      %s45 = ssub.s32 %s16, %s23
      %p46 = scmp.eq.s32.totalorder %s45, 0
      %s48 = sadd.s32 %s47, 1
      %s49 = scalar_select %p46, %s47, %s48
      %p52 = pneg %p46
      %p53 = scmp.eq.s32.totalorder %s16, 1
      %p54 = por %p52, %p53
      %p55 = scmp.ne.s32.totalorder %s47, %s50
      %p56 = scmp.eq.s32.totalorder %s16, 0
      %p57 = por %p55, %p56
      %p58 = scmp.ne.s32.totalorder %s47, %s50
      %p59 = scmp.eq.s32.totalorder %s21, 1
      %p60 = por %p58, %p59
      %p61 = scmp.ne.s32.totalorder %s50, %s51
      %p62 = scmp.eq.s32.totalorder %s21, 0
      %p63 = por %p61, %p62
      %p64 = scmp.ne.s32.totalorder %s50, %s51
      %p65 = scmp.eq.s32.totalorder %s22, 1
      %p66 = por %p64, %p65
      %p68 = scmp.ne.s32.totalorder %s51, %s67
      %p69 = scmp.eq.s32.totalorder %s22, 0
      %p70 = por %p68, %p69
      %p71 = scmp.le.s32.totalorder 1, %s16
      %p72 = scmp.lt.s32.totalorder %s16, 3
      %p73 = pnand %p71, %p72
      %p74 = pneg %p73
      // Predicated region
      $region9: #{tpu_custom_call.1} parent=5 // pred_check
        _
      $region10: #{tpu_custom_call.1} parent=5 // pred_check_branch
        %76 = sbr.rel (%p73) target = $region12
      $region11: #{tpu_custom_call.1} parent=5 // pred_region
        %s77 = ssub.s32 %s16, 1
        // Predicated region
        $region13: #{tpu_custom_call.1} parent=11 // pred_check
          %p78 = pneg %p37
        $region14: #{tpu_custom_call.1} parent=11 // pred_check_branch
          %80 = sbr.rel (%p78) target = $region16
        $region15: #{tpu_custom_call.1} parent=11 // pred_region
          %s82 = ssub.s32 256, 256
          %83 = vsyncadd [#allocation5], %s82
          %s84 = sshll.u32 [#allocation4], 4
          %s85 = int_to_ptr.vmem [resolvable:$true] %s84
          %90 = dma.hbm_to_vmem [thread:$0]  %s1, 256, %s85, [#allocation5], 128, 128, 8
        $region16: #{tpu_custom_call.1} parent=11 // pred_fallthru
          _
      $region12: #{tpu_custom_call.1} parent=5 // pred_fallthru
        _
      %p91 = scmp.lt.s32.totalorder %s16, 2
      // Predicated region
      $region17: #{tpu_custom_call.1} parent=5 // pred_check
        %p92 = pneg %p91
      $region18: #{tpu_custom_call.1} parent=5 // pred_check_branch
        %94 = sbr.rel (%p92) target = $region20
      $region19: #{tpu_custom_call.1} parent=5 // pred_region
        _
      $region20: #{tpu_custom_call.1} parent=5 // pred_fallthru
        _
      %p95 = scmp.le.s32.totalorder 1, %s16
      %p96 = scmp.lt.s32.totalorder %s16, 3
      %p97 = pnand %p95, %p96
      %p98 = pneg %p97
      // Predicated region
      $region21: #{tpu_custom_call.1} parent=5 // pred_check
        _
      $region22: #{tpu_custom_call.1} parent=5 // pred_check_branch
        %100 = sbr.rel (%p97) target = $region24
      $region23: #{tpu_custom_call.1} parent=5 // pred_region
        %s101 = ssub.s32 %s16, 1
        // Predicated region
        $region25: #{tpu_custom_call.1} parent=23 // pred_check
          %p102 = pneg %p37
        $region26: #{tpu_custom_call.1} parent=23 // pred_check_branch
          %104 = sbr.rel (%p102) target = $region28
        $region27: #{tpu_custom_call.1} parent=23 // pred_region
          %105 = dma.done [#allocation5], 256
        $region28: #{tpu_custom_call.1} parent=23 // pred_fallthru
          _
        %p106 = pneg %p37
        %p107 = pneg %p34
        %p108 = pneg %p63
        %p109 = pneg %p60
        %s110 = sand.u32 %s50, 1
        %s111 = scalar_lea.sflag [#allocation6], %s110
        %s112 = sand.u32 %s50, 1
        %s113 = smul.addr %s112, 32
        %s114 = scalar_lea.vmem [#allocation7], %s113
        %s115 = smul.u32 4, %s21
        %s116 = smul.u32 %s21, 32
        %s117 = sld [smem:[#allocation3 + %s116]]
        %s118 = scalar_lea.vmem [#allocation4], %s117
        %v119 = vld [vmem:[%s118] sm:$0x1]
        %s120 = sadd.s32 %s116, 1
        %s121 = sld [smem:[#allocation3 + %s120]]
        %s122 = scalar_lea.vmem [#allocation4], %s121
        %v123 = vld [vmem:[%s122] sm:$0x1]
        %s124 = sadd.s32 %s116, 2
        %s125 = sld [smem:[#allocation3 + %s124]]
        %s126 = scalar_lea.vmem [#allocation4], %s125
        %v127 = vld [vmem:[%s126] sm:$0x1]
        %s128 = sadd.s32 %s116, 3
        %s129 = sld [smem:[#allocation3 + %s128]]
        %s130 = scalar_lea.vmem [#allocation4], %s129
        %v131 = vld [vmem:[%s130] sm:$0x1]
        %s132 = sadd.s32 %s116, 4
        %s133 = sld [smem:[#allocation3 + %s132]]
        %s134 = scalar_lea.vmem [#allocation4], %s133
        %v135 = vld [vmem:[%s134] sm:$0x1]
        %s136 = sadd.s32 %s116, 5
        %s137 = sld [smem:[#allocation3 + %s136]]
        %s138 = scalar_lea.vmem [#allocation4], %s137
        %v139 = vld [vmem:[%s138] sm:$0x1]
        %s140 = sadd.s32 %s116, 6
        %s141 = sld [smem:[#allocation3 + %s140]]
        %s142 = scalar_lea.vmem [#allocation4], %s141
        %v143 = vld [vmem:[%s142] sm:$0x1]
        %s144 = sadd.s32 %s116, 7
        %s145 = sld [smem:[#allocation3 + %s144]]
        %s146 = scalar_lea.vmem [#allocation4], %s145
        %v147 = vld [vmem:[%s146] sm:$0x1]
        %s148 = sadd.s32 %s116, 8
        %s149 = sld [smem:[#allocation3 + %s148]]
        %s150 = scalar_lea.vmem [#allocation4], %s149
        %v151 = vld [vmem:[%s150] sm:$0x1]
        %s152 = sadd.s32 %s116, 9
        %s153 = sld [smem:[#allocation3 + %s152]]
        %s154 = scalar_lea.vmem [#allocation4], %s153
        %v155 = vld [vmem:[%s154] sm:$0x1]
        %s156 = sadd.s32 %s116, 10
        %s157 = sld [smem:[#allocation3 + %s156]]
        %s158 = scalar_lea.vmem [#allocation4], %s157
        %v159 = vld [vmem:[%s158] sm:$0x1]
        %s160 = sadd.s32 %s116, 11
        %s161 = sld [smem:[#allocation3 + %s160]]
        %s162 = scalar_lea.vmem [#allocation4], %s161
        %v163 = vld [vmem:[%s162] sm:$0x1]
        %s164 = sadd.s32 %s116, 12
        %s165 = sld [smem:[#allocation3 + %s164]]
        %s166 = scalar_lea.vmem [#allocation4], %s165
        %v167 = vld [vmem:[%s166] sm:$0x1]
        %s168 = sadd.s32 %s116, 13
        %s169 = sld [smem:[#allocation3 + %s168]]
        %s170 = scalar_lea.vmem [#allocation4], %s169
        %v171 = vld [vmem:[%s170] sm:$0x1]
        %s172 = sadd.s32 %s116, 14
        %s173 = sld [smem:[#allocation3 + %s172]]
        %s174 = scalar_lea.vmem [#allocation4], %s173
        %v175 = vld [vmem:[%s174] sm:$0x1]
        %s176 = sadd.s32 %s116, 15
        %s177 = sld [smem:[#allocation3 + %s176]]
        %s178 = scalar_lea.vmem [#allocation4], %s177
        %v179 = vld [vmem:[%s178] sm:$0x1]
        %s180 = sadd.s32 %s116, 16
        %s181 = sld [smem:[#allocation3 + %s180]]
        %s182 = scalar_lea.vmem [#allocation4], %s181
        %v183 = vld [vmem:[%s182] sm:$0x1]
        %s184 = sadd.s32 %s116, 17
        %s185 = sld [smem:[#allocation3 + %s184]]
        %s186 = scalar_lea.vmem [#allocation4], %s185
        %v187 = vld [vmem:[%s186] sm:$0x1]
        %s188 = sadd.s32 %s116, 18
        %s189 = sld [smem:[#allocation3 + %s188]]
        %s190 = scalar_lea.vmem [#allocation4], %s189
        %v191 = vld [vmem:[%s190] sm:$0x1]
        %s192 = sadd.s32 %s116, 19
        %s193 = sld [smem:[#allocation3 + %s192]]
        %s194 = scalar_lea.vmem [#allocation4], %s193
        %v195 = vld [vmem:[%s194] sm:$0x1]
        %s196 = sadd.s32 %s116, 20
        %s197 = sld [smem:[#allocation3 + %s196]]
        %s198 = scalar_lea.vmem [#allocation4], %s197
        %v199 = vld [vmem:[%s198] sm:$0x1]
        %s200 = sadd.s32 %s116, 21
        %s201 = sld [smem:[#allocation3 + %s200]]
        %s202 = scalar_lea.vmem [#allocation4], %s201
        %v203 = vld [vmem:[%s202] sm:$0x1]
        %s204 = sadd.s32 %s116, 22
        %s205 = sld [smem:[#allocation3 + %s204]]
        %s206 = scalar_lea.vmem [#allocation4], %s205
        %v207 = vld [vmem:[%s206] sm:$0x1]
        %s208 = sadd.s32 %s116, 23
        %s209 = sld [smem:[#allocation3 + %s208]]
        %s210 = scalar_lea.vmem [#allocation4], %s209
        %v211 = vld [vmem:[%s210] sm:$0x1]
        %s212 = sadd.s32 %s116, 24
        %s213 = sld [smem:[#allocation3 + %s212]]
        %s214 = scalar_lea.vmem [#allocation4], %s213
        %v215 = vld [vmem:[%s214] sm:$0x1]
        %s216 = sadd.s32 %s116, 25
        %s217 = sld [smem:[#allocation3 + %s216]]
        %s218 = scalar_lea.vmem [#allocation4], %s217
        %v219 = vld [vmem:[%s218] sm:$0x1]
        %s220 = sadd.s32 %s116, 26
        %s221 = sld [smem:[#allocation3 + %s220]]
        %s222 = scalar_lea.vmem [#allocation4], %s221
        %v223 = vld [vmem:[%s222] sm:$0x1]
        %s224 = sadd.s32 %s116, 27
        %s225 = sld [smem:[#allocation3 + %s224]]
        %s226 = scalar_lea.vmem [#allocation4], %s225
        %v227 = vld [vmem:[%s226] sm:$0x1]
        %s228 = sadd.s32 %s116, 28
        %s229 = sld [smem:[#allocation3 + %s228]]
        %s230 = scalar_lea.vmem [#allocation4], %s229
        %v231 = vld [vmem:[%s230] sm:$0x1]
        %s232 = sadd.s32 %s116, 29
        %s233 = sld [smem:[#allocation3 + %s232]]
        %s234 = scalar_lea.vmem [#allocation4], %s233
        %v235 = vld [vmem:[%s234] sm:$0x1]
        %s236 = sadd.s32 %s116, 30
        %s237 = sld [smem:[#allocation3 + %s236]]
        %s238 = scalar_lea.vmem [#allocation4], %s237
        %v239 = vld [vmem:[%s238] sm:$0x1]
        %s240 = sadd.s32 %s116, 31
        %s241 = sld [smem:[#allocation3 + %s240]]
        %s242 = scalar_lea.vmem [#allocation4], %s241
        %v243 = vld [vmem:[%s242] sm:$0x1]
        %v245 = vrot.slane %v123, 7
        %v248 = vrot.slane %v127, 6
        %v251 = vrot.slane %v131, 5
        %v254 = vrot.slane %v135, 4
        %v257 = vrot.slane %v139, 3
        %v260 = vrot.slane %v143, 2
        %v263 = vrot.slane %v147, 1
        %v266 = vrot.slane %v155, 7
        %v269 = vrot.slane %v159, 6
        %v272 = vrot.slane %v163, 5
        %v275 = vrot.slane %v167, 4
        %v278 = vrot.slane %v171, 3
        %v281 = vrot.slane %v175, 2
        %v284 = vrot.slane %v179, 1
        %vm286 = vcmask 1040384
        %v287 = vsel %vm286, %v119, %v245
        %vm288 = vcmask 1041408
        %v289 = vsel %vm288, %v287, %v248
        %vm290 = vcmask 1042432
        %v291 = vsel %vm290, %v289, %v251
        %vm292 = vcmask 1043456
        %v293 = vsel %vm292, %v291, %v254
        %vm294 = vcmask 1044480
        %v295 = vsel %vm294, %v293, %v257
        %vm296 = vcmask 1045504
        %v297 = vsel %vm296, %v295, %v260
        %vm298 = vcmask 1046528
        %v299 = vsel %vm298, %v297, %v263
        %v300 = vsel %vm286, %v151, %v266
        %v301 = vsel %vm288, %v300, %v269
        %v302 = vsel %vm290, %v301, %v272
        %v303 = vsel %vm292, %v302, %v275
        %v304 = vsel %vm294, %v303, %v278
        %v305 = vsel %vm296, %v304, %v281
        %v306 = vsel %vm298, %v305, %v284
        %v308 = vrot.slane %v187, 7
        %v311 = vrot.slane %v191, 6
        %v314 = vrot.slane %v195, 5
        %v317 = vrot.slane %v199, 4
        %v320 = vrot.slane %v203, 3
        %v323 = vrot.slane %v207, 2
        %v326 = vrot.slane %v211, 1
        %v329 = vrot.slane %v219, 7
        %v332 = vrot.slane %v223, 6
        %v335 = vrot.slane %v227, 5
        %v338 = vrot.slane %v231, 4
        %v341 = vrot.slane %v235, 3
        %v344 = vrot.slane %v239, 2
        %v347 = vrot.slane %v243, 1
        %v349 = vsel %vm286, %v183, %v308
        %v350 = vsel %vm288, %v349, %v311
        %v351 = vsel %vm290, %v350, %v314
        %v352 = vsel %vm292, %v351, %v317
        %v353 = vsel %vm294, %v352, %v320
        %v354 = vsel %vm296, %v353, %v323
        %v355 = vsel %vm298, %v354, %v326
        %v356 = vsel %vm286, %v215, %v329
        %v357 = vsel %vm288, %v356, %v332
        %v358 = vsel %vm290, %v357, %v335
        %v359 = vsel %vm292, %v358, %v338
        %v360 = vsel %vm294, %v359, %v341
        %v361 = vsel %vm296, %v360, %v344
        %v362 = vsel %vm298, %v361, %v347
        %363 = vst [vmem:[%s114] sm:$0xff] %v299
        %364 = vst [vmem:[%s114 + $0x8] sm:$0xff] %v306
        %365 = vst [vmem:[%s114 + $0x10] sm:$0xff] %v355
        %366 = vst [vmem:[%s114 + $0x18] sm:$0xff] %v362
        %s367 = sand.u32 %s50, 1
        %s368 = scalar_lea.sflag [#allocation6], %s367
        %s369 = sand.u32 %s50, 1
        %s370 = smul.addr %s369, 32
        %s371 = scalar_lea.vmem [#allocation7], %s370
        // Predicated region
        $region29: #{tpu_custom_call.1} parent=23 // pred_check
          %p372 = pneg %p60
        $region30: #{tpu_custom_call.1} parent=23 // pred_check_branch
          %374 = sbr.rel (%p372) target = $region32
        $region31: #{tpu_custom_call.1} parent=23 // pred_region
          %s375 = smul.u32 4, %s21
          %s377 = ssub.s32 512, 512
          %378 = vsyncadd %s368, %s377
          %s379 = smul.addr %s375, 128
          %s380 = scalar_lea.hbm %s2, %s379
          %s381 = sshll.u32 %s371, 4
          %s382 = int_to_ptr.vmem [resolvable:$true] %s381
          %387 = dma.vmem_to_hbm [thread:$0]  %s382, 512, %s380, %s368, 128, 128, 8
        $region32: #{tpu_custom_call.1} parent=23 // pred_fallthru
          _
      $region24: #{tpu_custom_call.1} parent=5 // pred_fallthru
        _
      %p388 = scmp.le.s32.totalorder 2, %s16
      // Predicated region
      $region33: #{tpu_custom_call.1} parent=5 // pred_check
        %p389 = pneg %p388
      $region34: #{tpu_custom_call.1} parent=5 // pred_check_branch
        %391 = sbr.rel (%p389) target = $region36
      $region35: #{tpu_custom_call.1} parent=5 // pred_region
        %s392 = ssub.s32 %s16, 2
        // Predicated region
        $region37: #{tpu_custom_call.1} parent=35 // pred_check
          %p393 = pneg %p66
        $region38: #{tpu_custom_call.1} parent=35 // pred_check_branch
          %395 = sbr.rel (%p393) target = $region40
        $region39: #{tpu_custom_call.1} parent=35 // pred_region
          %s396 = sand.u32 %s51, 1
          %s397 = scalar_lea.sflag [#allocation6], %s396
          %s398 = sand.u32 %s51, 1
          %s399 = smul.addr %s398, 32
          %s400 = scalar_lea.vmem [#allocation7], %s399
          %401 = dma.done %s397, 512
        $region40: #{tpu_custom_call.1} parent=35 // pred_fallthru
          _
      $region36: #{tpu_custom_call.1} parent=5 // pred_fallthru
        _
    $region6: #{tpu_custom_call.1} parent=1 // loop_footer
      %s20 = sadd.s32 1, %s16
    $region7: #{tpu_custom_call.1} parent=1 // loop_footer_branch
      %15 = sbr.rel target = $region3
    $region8: #{tpu_custom_call.1} parent=1 // loop_exit
      _
    %402 = vsyncpa [#allocation5], 1
    %s403 = scalar_lea.sflag [#allocation5], 1
    %404 = vsyncpa %s403, 1
    %405 = vsyncpa [#allocation6], 1
    %s406 = scalar_lea.sflag [#allocation6], 1
    %407 = vsyncpa %s406, 1

</llo_original>
